<compile_context>
chip_gen: v7x
topology: tpu7x:2x2x1
jax: 0.10.0
libtpu: 0.0.40
codegen_flags: <defaults>
</compile_context>

<pallas_src>
import functools

import jax
import jax.numpy as jnp
from jax import lax
from jax.experimental import pallas as pl
from jax.experimental.pallas import tpu as pltpu

_LANE = 128
_SUBLANE = 8
_VMEM_BUDGET_BYTES = 20 * 1024 * 1024  # headroom under the 32 MiB scoped default


def _round_up(x, m):
    return (x + m - 1) // m * m


def _mlp_kernel(x_ref, w1_ref, b1_ref, w2_ref, b2_ref, ot_ref):
    # h^T = W1 @ x^T : contract the in-feature axis of both operands.
    # (n_hidden, n_feature) x (TB, n_feature) -> (n_hidden, TB); batch on lanes.
    h_t = lax.dot_general(
        w1_ref[...], x_ref[...],
        dimension_numbers=(((1,), (1,)), ((), ())),
        preferred_element_type=jnp.float32,
    )
    h_t = jnp.tanh(h_t + b1_ref[...])            # lane-dense bias add + tanh (f32)
    # out^T = W2 @ h^T : (n_output, n_hidden) x (n_hidden, TB) -> (n_output, TB)
    o_t = lax.dot_general(
        w2_ref[...], h_t,
        dimension_numbers=(((1,), (0,)), ((), ())),
        preferred_element_type=jnp.float32,
    )
    ot_ref[...] = (o_t + b2_ref[...]).astype(ot_ref.dtype)


def _vmem_step_bytes(tb, n_feature, n_hidden, n_output, x_bytes):
    """Per-step VMEM estimate with TPU tile padding (lane->128, sublane->8)."""
    x_blk = tb * max(_round_up(n_feature, _LANE), _LANE) * x_bytes  # lane-padded
    o_blk = _round_up(n_output, _SUBLANE) * tb * 4                  # sublane-padded
    h_blk = _round_up(n_hidden, _SUBLANE) * tb * 4                  # h^T intermediate
    return 2 * x_blk + 2 * o_blk + h_blk                            # x / out double-buffered


def _select_tile(B, block_b, n_feature, n_hidden, n_output, x_bytes):
    if B <= _LANE:
        # Tiny batch: a single block padded to the sublane multiple.
        return _round_up(B, _SUBLANE)
    assert block_b % _LANE == 0, "block_b must be a multiple of 128"
    b128 = _round_up(B, _LANE)
    # Aim for ~8 grid steps (>=2 so v7x's two TensorCores both get work and the
    # DMA pipeline stays overlapped), but never below 128 nor above block_b.
    tb = min(block_b, max(_LANE, _round_up(pl.cdiv(b128, 8), _LANE)))
    # Clamp against the lane-padded VMEM footprint.
    while tb > _LANE and _vmem_step_bytes(tb, n_feature, n_hidden, n_output,
                                          x_bytes) > _VMEM_BUDGET_BYTES:
        tb = max(_LANE, _round_up(tb // 2, _LANE))
    return tb


@functools.partial(
    jax.jit, static_argnames=("block_b", "stream_bf16", "transposed_output"))
def binary_classifier_forward(x, w1, b1, w2, b2, *, block_b=8192,
                              stream_bf16=False, transposed_output=False):
    """Forward pass of BinaryClassifier.

    x : (B, n_feature)
    w1: (n_hidden, n_feature)   b1: (n_hidden,)   (PyTorch nn.Linear layout)
    w2: (n_output, n_hidden)    b2: (n_output,)
    returns (B, n_output), or (n_output, B) if transposed_output=True.
    """
    B, n_feature = x.shape
    n_hidden = w1.shape[0]
    n_output = w2.shape[0]
    out_dtype = x.dtype

    if stream_bf16:
        # Halve the dominant HBM read stream; accumulation / bias / tanh stay f32.
        x = x.astype(jnp.bfloat16)
        w1 = w1.astype(jnp.bfloat16)
        w2 = w2.astype(jnp.bfloat16)
    x_bytes = jnp.dtype(x.dtype).itemsize

    tb = _select_tile(B, block_b, n_feature, n_hidden, n_output, x_bytes)
    b_pad = _round_up(B, tb)
    if b_pad != B:
        # Padded rows produce junk (W2*tanh(b1)+b2) but are sliced off below;
        # no in-kernel reduction over the batch axis, so no masking needed.
        x = jnp.pad(x, ((0, b_pad - B), (0, 0)))

    b1_2d = b1.astype(jnp.float32).reshape(n_hidden, 1)   # broadcast over batch lanes
    b2_2d = b2.astype(jnp.float32).reshape(n_output, 1)

    flops = 2 * b_pad * (n_feature * n_hidden + n_hidden * n_output)
    bytes_accessed = (
        x_bytes * (b_pad * n_feature + n_hidden * n_feature + n_output * n_hidden)
        + 4 * (n_output * b_pad + n_hidden + n_output)
    )

    out_t = pl.pallas_call(
        _mlp_kernel,
        out_shape=jax.ShapeDtypeStruct((n_output, b_pad), out_dtype),
        grid_spec=pl.GridSpec(
            grid=(b_pad // tb,),
            in_specs=[
                pl.BlockSpec((tb, n_feature), lambda i: (i, 0)),        # x streams
                pl.BlockSpec((n_hidden, n_feature), lambda i: (0, 0)),  # W1 resident
                pl.BlockSpec((n_hidden, 1), lambda i: (0, 0)),          # b1 resident
                pl.BlockSpec((n_output, n_hidden), lambda i: (0, 0)),   # W2 resident
                pl.BlockSpec((n_output, 1), lambda i: (0, 0)),          # b2 resident
            ],
            out_specs=pl.BlockSpec((n_output, tb), lambda i: (0, i)),   # lane-dense
        ),
        compiler_params=pltpu.CompilerParams(
            dimension_semantics=("parallel",),   # shard batch tiles over v7x's 2 TCs
        ),
        cost_estimate=pl.CostEstimate(
            flops=flops,
            transcendentals=b_pad * n_hidden,
            bytes_accessed=bytes_accessed,
        ),
    )(x, w1, b1_2d, w2, b2_2d)

    out_t = out_t[:, :B]
    if transposed_output:
        return out_t                 # (n_output, B): no extra HBM relayout pass
    return out_t.T                   # module contract: (B, n_output)


if __name__ == "__main__":
    # Small shapes consistent with the module's forward.
    batch, n_feature, n_hidden, n_output = 8, 16, 32, 2

    key = jax.random.PRNGKey(0)
    kx, kw1, kb1, kw2, kb2, kxb = jax.random.split(key, 6)

    x = jax.random.normal(kx, (batch, n_feature), dtype=jnp.float32)
    # PyTorch nn.Linear weight layout: (out_features, in_features)
    w1 = jax.random.normal(kw1, (n_hidden, n_feature), dtype=jnp.float32) * 0.1
    b1 = jax.random.normal(kb1, (n_hidden,), dtype=jnp.float32) * 0.1
    w2 = jax.random.normal(kw2, (n_output, n_hidden), dtype=jnp.float32) * 0.1
    b2 = jax.random.normal(kb2, (n_output,), dtype=jnp.float32) * 0.1

    out = binary_classifier_forward(x, w1, b1, w2, b2)
    jax.block_until_ready(out)

    # Reference check in plain JAX (same math as the PyTorch forward).
    ref = jnp.tanh(x @ w1.T + b1) @ w2.T + b2
    assert out.shape == (batch, n_output)
    assert jnp.allclose(out, ref, atol=1e-5, rtol=1e-5)

    # Multi-step tiled path (B > 128 -> multiple grid steps, padded batch).
    xb = jax.random.normal(kxb, (300, n_feature), dtype=jnp.float32)
    outb = binary_classifier_forward(xb, w1, b1, w2, b2)
    jax.block_until_ready(outb)
    refb = jnp.tanh(xb @ w1.T + b1) @ w2.T + b2
    assert outb.shape == (300, n_output)
    assert jnp.allclose(outb, refb, atol=1e-5, rtol=1e-5)

    # bf16-streamed path (looser tolerance vs. the f32 reference).
    outc = binary_classifier_forward(xb, w1, b1, w2, b2, stream_bf16=True)
    jax.block_until_ready(outc)
    assert outc.shape == (300, n_output)
    assert jnp.allclose(outc, refb, atol=2e-2, rtol=2e-2)

    # Native transposed output (class axis leading) for relayout-free consumers.
    outd = binary_classifier_forward(xb, w1, b1, w2, b2, transposed_output=True)
    jax.block_until_ready(outd)
    assert outd.shape == (n_output, 300)
    assert jnp.allclose(outd.T, refb, atol=1e-5, rtol=1e-5)

    # TODO(synk): predict()'s softmax + per-row argmax loop is a host-side
    # inference helper, not part of forward(); implement in plain JAX if needed.
    print("KERNEL_OK")
</pallas_src>

<mosaic_0001>
module attributes {stable_mosaic.version = 11 : i64} {
  func.func @_mlp_kernel(%arg0: i32, %arg1: memref<8x16xf32, #tpu.memory_space<vmem>>, %arg2: memref<32x16xf32, #tpu.memory_space<vmem>>, %arg3: memref<32x1xf32, #tpu.memory_space<vmem>>, %arg4: memref<2x32xf32, #tpu.memory_space<vmem>>, %arg5: memref<2x1xf32, #tpu.memory_space<vmem>>, %arg6: memref<2x8xf32, #tpu.memory_space<vmem>>) attributes {dimension_semantics = [#tpu.dimension_semantics<parallel>], iteration_bounds = array<i64: 1>, scalar_prefetch = 0 : i64, scratch_operands = 0 : i64, tpu.core_type = #tpu.core_type<tc>, window_params = [{transform_indices = @transform_0, window_bounds = array<i64: 8, 16>}, {pipeline_mode = #tpu.pipeline_mode<synchronous>, transform_indices = @transform_1, window_bounds = array<i64: 32, 16>}, {pipeline_mode = #tpu.pipeline_mode<synchronous>, transform_indices = @transform_2, window_bounds = array<i64: 32, 1>}, {pipeline_mode = #tpu.pipeline_mode<synchronous>, transform_indices = @transform_3, window_bounds = array<i64: 2, 32>}, {pipeline_mode = #tpu.pipeline_mode<synchronous>, transform_indices = @transform_4, window_bounds = array<i64: 2, 1>}, {transform_indices = @transform_5, window_bounds = array<i64: 2, 8>}]} {
    %c0 = arith.constant 0 : index
    %c0_0 = arith.constant 0 : index
    %0 = vector.load %arg2[%c0, %c0_0] : memref<32x16xf32, #tpu.memory_space<vmem>>, vector<32x16xf32>
    %c0_1 = arith.constant 0 : index
    %c0_2 = arith.constant 0 : index
    %1 = vector.load %arg1[%c0_1, %c0_2] : memref<8x16xf32, #tpu.memory_space<vmem>>, vector<8x16xf32>
    %cst = arith.constant dense<0.000000e+00> : vector<32x8xf32>
    %2 = tpu.matmul %0, %1, %cst {dimension_numbers = #tpu.dot_dimension_numbers<[1], [1], [0], [0], [0, 0, 1, 0], [], []>} : vector<32x16xf32>, vector<8x16xf32>, vector<32x8xf32> -> vector<32x8xf32>
    %c0_3 = arith.constant 0 : index
    %c0_4 = arith.constant 0 : index
    %3 = vector.load %arg3[%c0_3, %c0_4] : memref<32x1xf32, #tpu.memory_space<vmem>>, vector<32x1xf32>
    %4 = vector.broadcast %3 : vector<32x1xf32> to vector<32x8xf32>
    %5 = arith.addf %2, %4 : vector<32x8xf32>
    %6 = math.tanh %5 : vector<32x8xf32>
    %c0_5 = arith.constant 0 : index
    %c0_6 = arith.constant 0 : index
    %7 = vector.load %arg4[%c0_5, %c0_6] : memref<2x32xf32, #tpu.memory_space<vmem>>, vector<2x32xf32>
    %cst_7 = arith.constant dense<0.000000e+00> : vector<2x8xf32>
    %8 = tpu.matmul %7, %6, %cst_7 {dimension_numbers = #tpu.dot_dimension_numbers<[1], [0], [0], [1], [0, 0, 1, 1], [], []>} : vector<2x32xf32>, vector<32x8xf32>, vector<2x8xf32> -> vector<2x8xf32>
    %c0_8 = arith.constant 0 : index
    %c0_9 = arith.constant 0 : index
    %9 = vector.load %arg5[%c0_8, %c0_9] : memref<2x1xf32, #tpu.memory_space<vmem>>, vector<2x1xf32>
    %10 = vector.broadcast %9 : vector<2x1xf32> to vector<2x8xf32>
    %11 = arith.addf %8, %10 : vector<2x8xf32>
    %c0_10 = arith.constant 0 : index
    %c0_11 = arith.constant 0 : index
    %12 = vector.load %arg6[%c0_10, %c0_11] : memref<2x8xf32, #tpu.memory_space<vmem>>, vector<2x8xf32>
    tpu.vector_store %arg6[%c0_10, %c0_11], %11 {strides = array<i32>} : memref<2x8xf32, #tpu.memory_space<vmem>>, vector<2x8xf32>,
    return
  }
  func.func @transform_0(%arg0: i32) -> (i32, i32) {
    %c0_i32 = arith.constant 0 : i32
    %c0_i32_0 = arith.constant 0 : i32
    return %arg0, %c0_i32 : i32, i32
  }
  func.func @transform_1(%arg0: i32) -> (i32, i32) {
    %c0_i32 = arith.constant 0 : i32
    %c0_i32_0 = arith.constant 0 : i32
    %c0_i32_1 = arith.constant 0 : i32
    return %c0_i32, %c0_i32_0 : i32, i32
  }
  func.func @transform_2(%arg0: i32) -> (i32, i32) {
    %c0_i32 = arith.constant 0 : i32
    %c0_i32_0 = arith.constant 0 : i32
    %c0_i32_1 = arith.constant 0 : i32
    return %c0_i32, %c0_i32_0 : i32, i32
  }
  func.func @transform_3(%arg0: i32) -> (i32, i32) {
    %c0_i32 = arith.constant 0 : i32
    %c0_i32_0 = arith.constant 0 : i32
    %c0_i32_1 = arith.constant 0 : i32
    return %c0_i32, %c0_i32_0 : i32, i32
  }
  func.func @transform_4(%arg0: i32) -> (i32, i32) {
    %c0_i32 = arith.constant 0 : i32
    %c0_i32_0 = arith.constant 0 : i32
    %c0_i32_1 = arith.constant 0 : i32
    return %c0_i32, %c0_i32_0 : i32, i32
  }
  func.func @transform_5(%arg0: i32) -> (i32, i32) {
    %c0_i32 = arith.constant 0 : i32
    %c0_i32_0 = arith.constant 0 : i32
    return %c0_i32, %arg0 : i32, i32
  }
}

</mosaic_0001>

<llo_original>
// kernel: binary_classifier_forward.1
$region0: #{binary_classifier_forward.1}
  #allocation0 [shape = 'u32[]', space=smem, size = 0x4, offset = 0x4, fixed_abs, tag = 'smem constant byte address 0x4 - core index']
  #allocation1 [shape = 'u32[144,128]{1,0:T(1,128)}', space=vmem, size = 0x12000, scoped, tag = 'internal scratch']
  %s0 = inlined_call_operand.vmem [shape: f32[8,16], index: 0, kind: input, shape index: {}]
  %s1 = inlined_call_operand.vmem [shape: f32[32,16], index: 1, kind: input, shape index: {}]
  %s2 = inlined_call_operand.vmem [shape: f32[32,1], index: 2, kind: input, shape index: {}]
  %s3 = inlined_call_operand.vmem [shape: f32[2,32], index: 3, kind: input, shape index: {}]
  %s4 = inlined_call_operand.vmem [shape: f32[2,1], index: 4, kind: input, shape index: {}]
  %s5 = inlined_call_operand.hbm [shape: f32[2,8], index: 5, kind: output, shape index: {}]
  %s6 = sld [smem:[#allocation0]]
  $region30: #{binary_classifier_forward.1} parent=0
    _
  %s8 = ssub.s32 1, %s6
  %s9 = scalar_select 0, %s8, %s6
  $region1: #{binary_classifier_forward.1} parent=0
    #allocation2 [shape = 'u8[1024]{0}', space=vmem, size = 0x400, scoped, tag = 'output window, operand 0, single buffered']
    #allocation3 [shape = 's32[1]{0}', space=sflag, size = 0x4, scoped, tag = 'scoped memory for binary_classifier_forward.1']
    %10 = vsyncpa [#allocation3], 0
    // Predicated region
    $region2: #{binary_classifier_forward.1} parent=1 // pred_check
      _
    $region3: #{binary_classifier_forward.1} parent=1 // pred_check_branch
      %12 = sbr.rel (0) target = $region5
    $region4: #{binary_classifier_forward.1} parent=1 // pred_region
      _
    $region5: #{binary_classifier_forward.1} parent=1 // pred_fallthru
      _
    // Predicated region
    $region6: #{binary_classifier_forward.1} parent=1 // pred_check
      _
    $region7: #{binary_classifier_forward.1} parent=1 // pred_check_branch
      %14 = sbr.rel (0) target = $region9
    $region8: #{binary_classifier_forward.1} parent=1 // pred_region
      _
    $region9: #{binary_classifier_forward.1} parent=1 // pred_fallthru
      _
    // Predicated region
    $region10: #{binary_classifier_forward.1} parent=1 // pred_check
      _
    $region11: #{binary_classifier_forward.1} parent=1 // pred_check_branch
      %16 = sbr.rel (0) target = $region13
    $region12: #{binary_classifier_forward.1} parent=1 // pred_region
      _
    $region13: #{binary_classifier_forward.1} parent=1 // pred_fallthru
      _
    // Predicated region
    $region14: #{binary_classifier_forward.1} parent=1 // pred_check
      _
    $region15: #{binary_classifier_forward.1} parent=1 // pred_check_branch
      %18 = sbr.rel (0) target = $region17
    $region16: #{binary_classifier_forward.1} parent=1 // pred_region
      _
    $region17: #{binary_classifier_forward.1} parent=1 // pred_fallthru
      _
    // Predicated region
    $region18: #{binary_classifier_forward.1} parent=1 // pred_check
      _
    $region19: #{binary_classifier_forward.1} parent=1 // pred_check_branch
      %20 = sbr.rel (0) target = $region21
    $region20: #{binary_classifier_forward.1} parent=1 // pred_region
      _
    $region21: #{binary_classifier_forward.1} parent=1 // pred_fallthru
      _
    %v21 = vld [vmem:[%s1] sm:$0xff]
    %v22 = vld [vmem:[%s1 + $0x8] sm:$0xff]
    %v23 = vld [vmem:[%s1 + $0x10] sm:$0xff]
    %v24 = vld [vmem:[%s1 + $0x18] sm:$0xff]
    %v25 = vld [vmem:[%s0] sm:$0xff]
    %v26 = vld [vmem:[%s2] sm:$0xff]
    %v27 = vld [vmem:[%s2 + $0x8] sm:$0xff]
    %v28 = vld [vmem:[%s2 + $0x10] sm:$0xff]
    %v29 = vld [vmem:[%s2 + $0x18] sm:$0xff]
    %31 = vset.pattern.permute.xlu0 0
    %32 = vperm.xlu0 %31, %v26
    %v33 = vpop.permute.xlu0 %32
    %36 = vset.pattern.permute.xlu0 0
    %37 = vperm.xlu0 %36, %v27
    %v38 = vpop.permute.xlu0 %37
    %41 = vset.pattern.permute.xlu0 0
    %42 = vperm.xlu0 %41, %v28
    %v43 = vpop.permute.xlu0 %42
    %46 = vset.pattern.permute.xlu0 0
    %47 = vperm.xlu0 %46, %v29
    %v48 = vpop.permute.xlu0 %47
    %vm50 = vcmask 130048
    %v52 = vsel %vm50, %v21, 0
    %v55 = vsel %vm50, %v22, 0
    %v58 = vsel %vm50, %v23, 0
    %v61 = vsel %vm50, %v24, 0
    %v64 = vsel %vm50, %v25, 0
    %66 = vmatprep.subr.mxu0 0.0
    %67 = vmatpush1.xpose.msra.mxu0 %v64
    %68 = vmatprep.subr.mxu0 0.0
    %69 = vmatpush1.xpose.msra.mxu0 0.0
    %70 = vmatprep.subr.mxu0 0.0
    %71 = vmatpush1.xpose.msra.mxu0 0.0
    %72 = vmatprep.subr.mxu0 0.0
    %73 = vmatpush1.xpose.msra.mxu0 0.0
    %74 = vmatprep.subr.mxu0 0.0
    %75 = vmatpush1.xpose.msra.mxu0 0.0
    %76 = vmatprep.subr.mxu0 0.0
    %77 = vmatpush1.xpose.msra.mxu0 0.0
    %78 = vmatprep.subr.mxu0 0.0
    %79 = vmatpush1.xpose.msra.mxu0 0.0
    %80 = vmatprep.subr.mxu0 0.0
    %81 = vmatpush1.xpose.msra.mxu0 0.0
    %82 = vmatprep.subr.mxu0 0.0
    %83 = vmatpush1.xpose.msra.mxu0 0.0
    %84 = vmatprep.subr.mxu0 0.0
    %85 = vmatpush1.xpose.msra.mxu0 0.0
    %86 = vmatprep.subr.mxu0 0.0
    %87 = vmatpush1.xpose.msra.mxu0 0.0
    %88 = vmatprep.subr.mxu0 0.0
    %89 = vmatpush1.xpose.msra.mxu0 0.0
    %90 = vmatprep.subr.mxu0 0.0
    %91 = vmatpush1.xpose.msra.mxu0 0.0
    %92 = vmatprep.subr.mxu0 0.0
    %93 = vmatpush1.xpose.msra.mxu0 0.0
    %94 = vmatprep.subr.mxu0 0.0
    %95 = vmatpush1.xpose.msra.mxu0 0.0
    %96 = vmatprep.subr.mxu0 0.0
    %97 = vmatpush1.xpose.msra.mxu0 0.0
    %98 = vmatprep.subr.mxu0 0.0
    %99 = vmatpush1.xpose.msra.mxu0 0.0
    %100 = vmatprep.subr.mxu0 0.0
    %101 = vmatpush1.xpose.msra.mxu0 0.0
    %102 = vmatprep.subr.mxu0 0.0
    %103 = vmatpush1.xpose.msra.mxu0 0.0
    %104 = vmatprep.subr.mxu0 0.0
    %105 = vmatpush1.xpose.msra.mxu0 0.0
    %106 = vmatprep.subr.mxu0 0.0
    %107 = vmatpush1.xpose.msra.mxu0 0.0
    %108 = vmatprep.subr.mxu0 0.0
    %109 = vmatpush1.xpose.msra.mxu0 0.0
    %110 = vmatprep.subr.mxu0 0.0
    %111 = vmatpush1.xpose.msra.mxu0 0.0
    %112 = vmatprep.subr.mxu0 0.0
    %113 = vmatpush1.xpose.msra.mxu0 0.0
    %114 = vmatprep.subr.mxu0 0.0
    %115 = vmatpush1.xpose.msra.mxu0 0.0
    %116 = vmatprep.subr.mxu0 0.0
    %117 = vmatpush1.xpose.msra.mxu0 0.0
    %118 = vmatprep.subr.mxu0 0.0
    %119 = vmatpush1.xpose.msra.mxu0 0.0
    %120 = vmatprep.subr.mxu0 0.0
    %121 = vmatpush1.xpose.msra.mxu0 0.0
    %122 = vmatprep.subr.mxu0 0.0
    %123 = vmatpush1.xpose.msra.mxu0 0.0
    %124 = vmatprep.subr.mxu0 0.0
    %125 = vmatpush1.xpose.msra.mxu0 0.0
    %126 = vmatprep.subr.mxu0 0.0
    %127 = vmatpush1.xpose.msra.mxu0 0.0
    %128 = vmatprep.subr.mxu0 0.0
    %129 = vmatpush1.xpose.msra.mxu0 0.0
    %130 = vmatprep.mubr.f32.mxu0 0.0
    %131 = vmatmul.mubr.f32.gmra.mrb[0].mxu0 %v52
    %v132 = vpop.f32.mrb[0].mxu0
    %v133 = vadd.f32 %v33, %v132
    %v134 = vpop.f32.mrb[0].mxu0
    %135 = vmatprep.mubr.f32.mxu0 0.0
    %136 = vmatmul.mubr.f32.gmra.mrb[0].mxu0 %v55
    %v137 = vpop.f32.mrb[0].mxu0
    %v138 = vadd.f32 %v38, %v137
    %v139 = vpop.f32.mrb[0].mxu0
    %140 = vmatprep.mubr.f32.mxu0 0.0
    %141 = vmatmul.mubr.f32.gmra.mrb[0].mxu0 %v58
    %v142 = vpop.f32.mrb[0].mxu0
    %v143 = vadd.f32 %v43, %v142
    %v144 = vpop.f32.mrb[0].mxu0
    %145 = vmatprep.mubr.f32.mxu0 0.0
    %146 = vmatmul.mubr.f32.gmra.mrb[0].mxu0 %v61
    %v147 = vpop.f32.mrb[0].mxu0
    %v148 = vadd.f32 %v48, %v147
    %v149 = vpop.f32.mrb[0].mxu0
    %150 = vdwg.mxu0
    %v151 = vtanh.pop %v133
    %v152 = vtanh.pop %v138
    %v153 = vtanh.pop %v143
    %v154 = vtanh.pop %v148
    %v155 = vld [vmem:[%s3] sm:$0x3]
    %v156 = vld [vmem:[%s4] sm:$0x3]
    %158 = vset.pattern.permute.xlu0 0
    %159 = vperm.xlu0 %158, %v156
    %v160 = vpop.permute.xlu0 %159
    %vm162 = vcmask 261120
    %v164 = vsel %vm162, %v155, 0
    %166 = vmatprep.subr.mxu0 0.0
    %167 = vmatpush1.msra.mxu0 %v151
    %168 = vmatprep.subr.mxu0 0.0
    %169 = vmatpush1.msra.mxu0 %v152
    %170 = vmatprep.subr.mxu0 0.0
    %171 = vmatpush1.msra.mxu0 %v153
    %172 = vmatprep.subr.mxu0 0.0
    %173 = vmatpush1.msra.mxu0 %v154
    %174 = vmatprep.subr.mxu0 0.0
    %175 = vmatpush1.msra.mxu0 0.0
    %176 = vmatprep.subr.mxu0 0.0
    %177 = vmatpush1.msra.mxu0 0.0
    %178 = vmatprep.subr.mxu0 0.0
    %179 = vmatpush1.msra.mxu0 0.0
    %180 = vmatprep.subr.mxu0 0.0
    %181 = vmatpush1.msra.mxu0 0.0
    %182 = vmatprep.subr.mxu0 0.0
    %183 = vmatpush1.msra.mxu0 0.0
    %184 = vmatprep.subr.mxu0 0.0
    %185 = vmatpush1.msra.mxu0 0.0
    %186 = vmatprep.subr.mxu0 0.0
    %187 = vmatpush1.msra.mxu0 0.0
    %188 = vmatprep.subr.mxu0 0.0
    %189 = vmatpush1.msra.mxu0 0.0
    %190 = vmatprep.subr.mxu0 0.0
    %191 = vmatpush1.msra.mxu0 0.0
    %192 = vmatprep.subr.mxu0 0.0
    %193 = vmatpush1.msra.mxu0 0.0
    %194 = vmatprep.subr.mxu0 0.0
    %195 = vmatpush1.msra.mxu0 0.0
    %196 = vmatprep.subr.mxu0 0.0
    %197 = vmatpush1.msra.mxu0 0.0
    %198 = vmatprep.subr.mxu0 0.0
    %199 = vmatpush1.msra.mxu0 0.0
    %200 = vmatprep.subr.mxu0 0.0
    %201 = vmatpush1.msra.mxu0 0.0
    %202 = vmatprep.subr.mxu0 0.0
    %203 = vmatpush1.msra.mxu0 0.0
    %204 = vmatprep.subr.mxu0 0.0
    %205 = vmatpush1.msra.mxu0 0.0
    %206 = vmatprep.subr.mxu0 0.0
    %207 = vmatpush1.msra.mxu0 0.0
    %208 = vmatprep.subr.mxu0 0.0
    %209 = vmatpush1.msra.mxu0 0.0
    %210 = vmatprep.subr.mxu0 0.0
    %211 = vmatpush1.msra.mxu0 0.0
    %212 = vmatprep.subr.mxu0 0.0
    %213 = vmatpush1.msra.mxu0 0.0
    %214 = vmatprep.subr.mxu0 0.0
    %215 = vmatpush1.msra.mxu0 0.0
    %216 = vmatprep.subr.mxu0 0.0
    %217 = vmatpush1.msra.mxu0 0.0
    %218 = vmatprep.subr.mxu0 0.0
    %219 = vmatpush1.msra.mxu0 0.0
    %220 = vmatprep.subr.mxu0 0.0
    %221 = vmatpush1.msra.mxu0 0.0
    %222 = vmatprep.subr.mxu0 0.0
    %223 = vmatpush1.msra.mxu0 0.0
    %224 = vmatprep.subr.mxu0 0.0
    %225 = vmatpush1.msra.mxu0 0.0
    %226 = vmatprep.subr.mxu0 0.0
    %227 = vmatpush1.msra.mxu0 0.0
    %228 = vmatprep.subr.mxu0 0.0
    %229 = vmatpush1.msra.mxu0 0.0
    %230 = vmatprep.mubr.f32.mxu0 0.0
    %231 = vmatmul.mubr.f32.gmra.mrb[0].mxu0 %v164
    %v232 = vpop.f32.mrb[0].mxu0
    %v233 = vadd.f32 %v160, %v232
    %v234 = vpop.f32.mrb[0].mxu0
    %235 = vdwg.mxu0
    %vm236 = vcmask 58368
    %237 = vst.msk [vmem:[#allocation2] sm:$0x3] %vm236, %v233
    // Predicated region
    $region22: #{binary_classifier_forward.1} parent=1 // pred_check
      _
    $region23: #{binary_classifier_forward.1} parent=1 // pred_check_branch
      %239 = sbr.rel (0) target = $region25
    $region24: #{binary_classifier_forward.1} parent=1 // pred_region
      %s241 = ssub.s32 32, 32
      %242 = vsyncadd [#allocation3], %s241
      %s244 = sshll.u32 [#allocation2], 4
      %s245 = int_to_ptr.vmem [resolvable:$true] %s244
      %247 = dma.vmem_to_hbm [thread:$0]  %s245, 32, %s5, [#allocation3]
    $region25: #{binary_classifier_forward.1} parent=1 // pred_fallthru
      _
    // Predicated region
    $region26: #{binary_classifier_forward.1} parent=1 // pred_check
      _
    $region27: #{binary_classifier_forward.1} parent=1 // pred_check_branch
      %249 = sbr.rel (0) target = $region29
    $region28: #{binary_classifier_forward.1} parent=1 // pred_region
      %250 = dma.done [#allocation3], 32
    $region29: #{binary_classifier_forward.1} parent=1 // pred_fallthru
      _
    %251 = vsyncpa [#allocation3], 1

</llo_original>
